<compile_context>
chip_gen: v7x
topology: tpu7x:2x2x1
jax: 0.10.0
libtpu: 0.0.40
codegen_flags: <defaults>
</compile_context>

<pallas_src>
import functools

import jax
import jax.numpy as jnp
from jax.experimental import pallas as pl
from jax.experimental.pallas import tpu as pltpu


def _round_up(x, m):
    return ((x + m - 1) // m) * m


def frame_similarity_kernel(x_ref, wp_ref, wf_ref, bf_ref, o_ref, *,
                            t_valid, lookup_window, tc):
    # x_ref : [TR, F]   pooled per-frame features for one batch element
    # wp_ref: [F,  DP]  projection weight (torch weight.T, cols zero padded)
    # wf_ref: [LK, OP]  fc weight (torch weight.T, rows & cols zero padded)
    # bf_ref: [1,  OP]  fc bias (cols zero padded)
    # o_ref : [TR, OP]  output for this batch element
    TR = x_ref.shape[0]
    LK, OP = wf_ref.shape
    L = lookup_window
    P = (L - 1) // 2

    # Projection: MXU matmul with f32 accumulation.
    proj = jnp.dot(x_ref[...], wp_ref[...], preferred_element_type=jnp.float32)

    # L2 normalize (torch F.normalize, p=2, eps=1e-12) via a fused EUP rsqrt.
    ss = jnp.sum(proj * proj, axis=-1, keepdims=True)
    proj_n = proj * jax.lax.rsqrt(jnp.maximum(ss, 1e-24))          # [TR, DP]

    # Column operand padded with zero rows up to the 128-aligned roll extent.
    if tc > TR:
        pg_cols = jnp.concatenate(
            [proj_n, jnp.zeros((tc - TR, proj_n.shape[1]), jnp.float32)],
            axis=0)                                                # [TC, DP]
    else:
        pg_cols = proj_n

    # sims[t, s] = <proj_n[t], pg_cols[s]>; contract dim 1 of both operands so
    # the transposed operand folds into the MXU feed (no XLU transpose).
    sims = jax.lax.dot_general(
        proj_n, pg_cols, (((1,), (1,)), ((), ())),
        preferred_element_type=jnp.float32)                        # [TR, TC]

    # Banded lookup-window extraction with one strided XLU roll: row t is
    # rotated by P + t*(TC-1) == P - t (mod TC), so
    #   rolled[t, l] = sims[t, (t + l - P) mod TC].
    rolled = pltpu.roll(sims, P, 1, stride=tc - 1, stride_axis=0)

    # Boundary mask: band[t, l] = sims[t, t + l - P], zeroed outside [0, T)
    # and for padded lookup positions l >= L.
    t_iota = jax.lax.broadcasted_iota(jnp.int32, (TR, LK), 0)
    l_iota = jax.lax.broadcasted_iota(jnp.int32, (TR, LK), 1)
    idx = t_iota + l_iota - P
    valid = (idx >= 0) & (idx < t_valid) & (l_iota < L)
    band = jnp.where(valid, rolled[:, :LK], 0.0)                   # [TR, LK]

    # fc + bias + relu; lane-dense [TR, OP] store.
    out = jnp.dot(band, wf_ref[...], preferred_element_type=jnp.float32) + bf_ref[...]
    o_ref[...] = jnp.maximum(out, 0.0).astype(o_ref.dtype)


def frame_similarity(inputs, w_proj, w_fc, b_fc, lookup_window, *,
                     input_dtype=jnp.float32):
    """Forward pass of TransNetV2 FrameSimilarity.

    inputs: list of [B, C_i, T, H_i, W_i] arrays (NCTHW, like PyTorch); spatial
            sizes may differ between inputs (each is pooled independently).
    w_proj: [in_filters, similarity_dim]   (torch projection.weight.T)
    w_fc:   [lookup_window, output_dim]    (torch fc.weight.T)
    b_fc:   [1, output_dim] or [output_dim] (torch fc.bias)
    input_dtype: jnp.float32 (default) or jnp.bfloat16 to halve the HBM read
            of the pooled features / projection weight (f32 accumulation).
    """
    assert lookup_window % 2 == 1, "`lookup_window` must be odd"

    # Spatial mean pooling per input in XLA (each input pooled independently,
    # so inputs may have different H, W), then concat the tiny per-frame
    # descriptors: [B, T, F].
    pooled = [jnp.mean(v, axis=(3, 4)) for v in inputs]                  # [B, C_i, T]
    feats = jnp.transpose(jnp.concatenate(pooled, axis=1), (0, 2, 1))    # [B, T, F]

    B, T, F = feats.shape
    D = w_proj.shape[1]
    L, O = w_fc.shape
    assert L == lookup_window and w_proj.shape[0] == F

    TR = _round_up(T, 8)                    # rows: sublane-aligned only
    DP = _round_up(D, 128)                  # lanes: similarity dim
    OP = _round_up(O, 128)                  # lanes: output dim (lane-dense store)
    LK = _round_up(L, 128)                  # lanes: fc K tile
    TC = max(_round_up(T, 128), LK)         # sims column / roll extent

    feats = feats.astype(input_dtype)
    if TR > T:
        feats = jnp.pad(feats, ((0, 0), (0, TR - T), (0, 0)))
    w_proj_p = jnp.pad(w_proj.astype(input_dtype), ((0, 0), (0, DP - D)))
    w_fc_p = jnp.pad(w_fc.astype(jnp.float32), ((0, LK - L), (0, OP - O)))
    b_fc_p = jnp.pad(b_fc.astype(jnp.float32).reshape(1, O), ((0, 0), (0, OP - O)))

    kernel = functools.partial(frame_similarity_kernel,
                               t_valid=T, lookup_window=L, tc=TC)

    # Per-step VMEM budget: double-buffered blocks + live intermediates,
    # with 2x headroom, clamped to [32 MiB, 64 MiB] (v7x-safe).
    isz = jnp.dtype(input_dtype).itemsize
    est = (2 * TR * F * isz + 2 * F * DP * isz
           + 2 * LK * OP * 4 + 2 * 8 * OP * 4 + 2 * TR * OP * 4
           + (2 * TR * DP + TC * DP + 2 * TR * TC + 2 * TR * LK + TR * OP) * 4)
    vmem_limit = int(min(max(2 * est, 32 * 2 ** 20), 64 * 2 ** 20))

    out = pl.pallas_call(
        kernel,
        out_shape=jax.ShapeDtypeStruct((B, TR, OP), jnp.float32),
        grid_spec=pltpu.PrefetchScalarGridSpec(
            num_scalar_prefetch=0,
            grid=(B,),
            in_specs=[
                pl.BlockSpec((None, TR, F), lambda b: (b, 0, 0)),
                pl.BlockSpec((F, DP), lambda b: (0, 0)),
                pl.BlockSpec((LK, OP), lambda b: (0, 0)),
                pl.BlockSpec((1, OP), lambda b: (0, 0)),
            ],
            out_specs=pl.BlockSpec((None, TR, OP), lambda b: (b, 0, 0)),
        ),
        compiler_params=pltpu.CompilerParams(
            dimension_semantics=("parallel",),
            vmem_limit_bytes=vmem_limit),
    )(feats, w_proj_p, w_fc_p, b_fc_p)

    # Padded rows/lanes (t >= T, o >= O) hold relu(bias); keep this slice if
    # the call site changes.
    return out[:, :T, :O]


def frame_similarity_reference(inputs, w_proj, w_fc, b_fc, lookup_window):
    """Pure-JAX reference mirroring the PyTorch forward (HIGHEST-precision dots)."""
    hp = jax.lax.Precision.HIGHEST
    x = jnp.concatenate([jnp.mean(v, axis=(3, 4)) for v in inputs], axis=1)  # [B, F, T]
    x = jnp.transpose(x, (0, 2, 1))                                          # [B, T, F]
    x = jnp.matmul(x, w_proj, precision=hp)
    l2 = jnp.sqrt(jnp.sum(x * x, axis=-1, keepdims=True))
    x = x / jnp.maximum(l2, 1e-12)
    sims = jnp.einsum('btd,bsd->bts', x, x, precision=hp)
    P = (lookup_window - 1) // 2
    sims_p = jnp.pad(sims, ((0, 0), (0, 0), (P, P)))
    B, T, _ = sims.shape
    t = jnp.arange(T)[:, None]
    l = jnp.arange(lookup_window)[None, :]
    band = sims_p[:, t, t + l]                                               # [B, T, L]
    return jax.nn.relu(jnp.matmul(band, w_fc, precision=hp) + b_fc.reshape(1, 1, -1))


if __name__ == "__main__":
    # Small synthetic config consistent with the module; the two feature maps
    # have different spatial sizes (pooled independently, as in PyTorch).
    B, T = 2, 8
    C0, H0, W0 = 6, 4, 4
    C1, H1, W1 = 10, 6, 6
    in_filters = C0 + C1
    similarity_dim = 32
    lookup_window = 9                 # must be odd
    output_dim = 16

    key = jax.random.PRNGKey(0)
    k0, k1, k2, k3, k4 = jax.random.split(key, 5)

    x0 = jax.random.normal(k0, (B, C0, T, H0, W0), dtype=jnp.float32)
    x1 = jax.random.normal(k1, (B, C1, T, H1, W1), dtype=jnp.float32)

    w_proj = 0.1 * jax.random.normal(k2, (in_filters, similarity_dim), dtype=jnp.float32)
    w_fc = 0.1 * jax.random.normal(k3, (lookup_window, output_dim), dtype=jnp.float32)
    b_fc = 0.1 * jax.random.normal(k4, (1, output_dim), dtype=jnp.float32)

    out = frame_similarity([x0, x1], w_proj, w_fc, b_fc, lookup_window)
    out = jax.block_until_ready(out)

    ref = frame_similarity_reference([x0, x1], w_proj, w_fc, b_fc, lookup_window)
    assert out.shape == (B, T, output_dim)
    # MXU f32 matmuls (multi-pass) vs the XLA HIGHEST-precision reference agree
    # to ~1e-6; the tolerance leaves margin for a lower-precision MXU pass mode.
    assert jnp.allclose(out, ref, atol=5e-3, rtol=5e-3), "mismatch vs pure-JAX reference"

    print("KERNEL_OK")
</pallas_src>

<mosaic_0001>
module attributes {stable_mosaic.version = 11 : i64} {
  func.func @frame_similarity_kernel(%arg0: i32, %arg1: memref<1x8x16xf32, #tpu.memory_space<vmem>>, %arg2: memref<16x128xf32, #tpu.memory_space<vmem>>, %arg3: memref<128x128xf32, #tpu.memory_space<vmem>>, %arg4: memref<1x128xf32, #tpu.memory_space<vmem>>, %arg5: memref<1x8x128xf32, #tpu.memory_space<vmem>>) attributes {dimension_semantics = [#tpu.dimension_semantics<parallel>], iteration_bounds = array<i64: 2>, scalar_prefetch = 0 : i64, scratch_operands = 0 : i64, tpu.core_type = #tpu.core_type<tc>, window_params = [{transform_indices = @transform_0, window_bounds = array<i64: 1, 8, 16>}, {pipeline_mode = #tpu.pipeline_mode<synchronous>, transform_indices = @transform_1, window_bounds = array<i64: 16, 128>}, {pipeline_mode = #tpu.pipeline_mode<synchronous>, transform_indices = @transform_2, window_bounds = array<i64: 128, 128>}, {pipeline_mode = #tpu.pipeline_mode<synchronous>, transform_indices = @transform_3, window_bounds = array<i64: 1, 128>}, {transform_indices = @transform_4, window_bounds = array<i64: 1, 8, 128>}]} {
    %c0 = arith.constant 0 : index
    %c0_0 = arith.constant 0 : index
    %c0_1 = arith.constant 0 : index
    %0 = vector.load %arg1[%c0, %c0_0, %c0_1] : memref<1x8x16xf32, #tpu.memory_space<vmem>>, vector<1x8x16xf32>
    %1 = vector.shape_cast %0 : vector<1x8x16xf32> to vector<8x16xf32>
    %c0_2 = arith.constant 0 : index
    %c0_3 = arith.constant 0 : index
    %2 = vector.load %arg2[%c0_2, %c0_3] : memref<16x128xf32, #tpu.memory_space<vmem>>, vector<16x128xf32>
    %cst = arith.constant dense<0.000000e+00> : vector<8x128xf32>
    %3 = tpu.matmul %1, %2, %cst {dimension_numbers = #tpu.dot_dimension_numbers<[1], [0], [0], [1], [0, 0, 1, 1], [], []>} : vector<8x16xf32>, vector<16x128xf32>, vector<8x128xf32> -> vector<8x128xf32>
    %4 = arith.mulf %3, %3 : vector<8x128xf32>
    %cst_4 = arith.constant dense<0.000000e+00> : vector<8xf32>
    %5 = vector.multi_reduction <add>, %4, %cst_4 [1] : vector<8x128xf32> to vector<8xf32>
    %6 = vector.shape_cast %5 : vector<8xf32> to vector<8x1xf32>
    %cst_5 = arith.constant 1.000000e-24 : f32
    %7 = vector.broadcast %cst_5 : f32 to vector<8x1xf32>
    %8 = arith.maximumf %6, %7 : vector<8x1xf32>
    %9 = math.rsqrt %8 : vector<8x1xf32>
    %10 = vector.broadcast %9 : vector<8x1xf32> to vector<8x128xf32>
    %11 = arith.mulf %3, %10 : vector<8x128xf32>
    %cst_6 = arith.constant 0.000000e+00 : f32
    %12 = vector.broadcast %cst_6 : f32 to vector<120x128xf32>
    %13 = tpu.concatenate %11, %12 in 0 : vector<8x128xf32>, vector<120x128xf32> -> vector<128x128xf32>
    %cst_7 = arith.constant dense<0.000000e+00> : vector<8x128xf32>
    %14 = tpu.matmul %11, %13, %cst_7 {dimension_numbers = #tpu.dot_dimension_numbers<[1], [1], [0], [0], [0, 0, 1, 0], [], []>} : vector<8x128xf32>, vector<128x128xf32>, vector<8x128xf32> -> vector<8x128xf32>
    %c4_i32 = arith.constant 4 : i32
    %15 = tpu.dynamic_rotate %14 by %c4_i32 dim 1 {stride = 127 : si32, stride_dimension = 0 : si32} : vector<8x128xf32>, i32 -> vector<8x128xf32>
    %16 = tpu.iota {dimensions = array<i32: 0>} : vector<8x128xi32>
    %17 = tpu.iota {dimensions = array<i32: 1>} : vector<8x128xi32>
    %18 = arith.addi %16, %17 : vector<8x128xi32>
    %c4_i32_8 = arith.constant 4 : i32
    %19 = vector.broadcast %c4_i32_8 : i32 to vector<8x128xi32>
    %20 = arith.subi %18, %19 : vector<8x128xi32>
    %c0_i32 = arith.constant 0 : i32
    %21 = vector.broadcast %c0_i32 : i32 to vector<8x128xi32>
    %22 = arith.cmpi sge, %20, %21 : vector<8x128xi32>
    %c8_i32 = arith.constant 8 : i32
    %23 = vector.broadcast %c8_i32 : i32 to vector<8x128xi32>
    %24 = arith.cmpi slt, %20, %23 : vector<8x128xi32>
    %25 = arith.andi %22, %24 : vector<8x128xi1>
    %c9_i32 = arith.constant 9 : i32
    %26 = vector.broadcast %c9_i32 : i32 to vector<8x128xi32>
    %27 = arith.cmpi slt, %17, %26 : vector<8x128xi32>
    %28 = arith.andi %25, %27 : vector<8x128xi1>
    %cst_9 = arith.constant 0.000000e+00 : f32
    %29 = vector.broadcast %cst_9 : f32 to vector<8x128xf32>
    %30 = arith.select %28, %15, %29 : vector<8x128xi1>, vector<8x128xf32>
    %c0_10 = arith.constant 0 : index
    %c0_11 = arith.constant 0 : index
    %31 = vector.load %arg3[%c0_10, %c0_11] : memref<128x128xf32, #tpu.memory_space<vmem>>, vector<128x128xf32>
    %cst_12 = arith.constant dense<0.000000e+00> : vector<8x128xf32>
    %32 = tpu.matmul %30, %31, %cst_12 {dimension_numbers = #tpu.dot_dimension_numbers<[1], [0], [0], [1], [0, 0, 1, 1], [], []>} : vector<8x128xf32>, vector<128x128xf32>, vector<8x128xf32> -> vector<8x128xf32>
    %c0_13 = arith.constant 0 : index
    %c0_14 = arith.constant 0 : index
    %33 = vector.load %arg4[%c0_13, %c0_14] : memref<1x128xf32, #tpu.memory_space<vmem>>, vector<1x128xf32>
    %34 = vector.broadcast %33 : vector<1x128xf32> to vector<8x128xf32>
    %35 = arith.addf %32, %34 : vector<8x128xf32>
    %cst_15 = arith.constant 0.000000e+00 : f32
    %36 = vector.broadcast %cst_15 : f32 to vector<8x128xf32>
    %37 = arith.maximumf %35, %36 : vector<8x128xf32>
    %c0_16 = arith.constant 0 : index
    %c0_17 = arith.constant 0 : index
    %c0_18 = arith.constant 0 : index
    %38 = vector.load %arg5[%c0_16, %c0_17, %c0_18] : memref<1x8x128xf32, #tpu.memory_space<vmem>>, vector<1x8x128xf32>
    %39 = vector.shape_cast %38 : vector<1x8x128xf32> to vector<8x128xf32>
    %40 = vector.shape_cast %37 : vector<8x128xf32> to vector<1x8x128xf32>
    tpu.vector_store %arg5[%c0_16, %c0_17, %c0_18], %40 {strides = array<i32>} : memref<1x8x128xf32, #tpu.memory_space<vmem>>, vector<1x8x128xf32>,
    return
  }
  func.func @transform_0(%arg0: i32) -> (i32, i32, i32) {
    %c0_i32 = arith.constant 0 : i32
    %c0_i32_0 = arith.constant 0 : i32
    %c0_i32_1 = arith.constant 0 : i32
    return %arg0, %c0_i32, %c0_i32_0 : i32, i32, i32
  }
  func.func @transform_1(%arg0: i32) -> (i32, i32) {
    %c0_i32 = arith.constant 0 : i32
    %c0_i32_0 = arith.constant 0 : i32
    %c0_i32_1 = arith.constant 0 : i32
    return %c0_i32, %c0_i32_0 : i32, i32
  }
  func.func @transform_2(%arg0: i32) -> (i32, i32) {
    %c0_i32 = arith.constant 0 : i32
    %c0_i32_0 = arith.constant 0 : i32
    %c0_i32_1 = arith.constant 0 : i32
    return %c0_i32, %c0_i32_0 : i32, i32
  }
  func.func @transform_3(%arg0: i32) -> (i32, i32) {
    %c0_i32 = arith.constant 0 : i32
    %c0_i32_0 = arith.constant 0 : i32
    %c0_i32_1 = arith.constant 0 : i32
    return %c0_i32, %c0_i32_0 : i32, i32
  }
  func.func @transform_4(%arg0: i32) -> (i32, i32, i32) {
    %c0_i32 = arith.constant 0 : i32
    %c0_i32_0 = arith.constant 0 : i32
    %c0_i32_1 = arith.constant 0 : i32
    return %arg0, %c0_i32, %c0_i32_0 : i32, i32, i32
  }
}

</mosaic_0001>

<llo_original>
// kernel: tpu_custom_call.1
$region0: #{tpu_custom_call.1}
  #allocation0 [shape = 'u32[]', space=smem, size = 0x4, offset = 0x4, fixed_abs, tag = 'smem constant byte address 0x4 - core index']
  #allocation1 [shape = 'u32[144,128]{1,0:T(1,128)}', space=vmem, size = 0x12000, scoped, tag = 'internal scratch']
  %s0 = inlined_call_operand.hbm [shape: f32[2,8,16], index: 0, kind: input, shape index: {}]
  %s1 = inlined_call_operand.hbm [shape: f32[16,128], index: 1, kind: input, shape index: {}]
  %s2 = inlined_call_operand.hbm [shape: f32[128,128], index: 2, kind: input, shape index: {}]
  %s3 = inlined_call_operand.vmem [shape: f32[1,128], index: 3, kind: input, shape index: {}]
  %s4 = inlined_call_operand.hbm [shape: f32[2,8,128], index: 4, kind: output, shape index: {}]
  %s5 = sld [smem:[#allocation0]]
  $region61: #{tpu_custom_call.1} parent=0
    _
  %s7 = ssub.s32 1, %s5
  %s8 = scalar_select 0, %s7, %s5
  $region1: #{tpu_custom_call.1} parent=0
    #allocation2 [shape = 'u8[8192]{0}', space=vmem, size = 0x2000, scoped, tag = 'input window, operand 0']
    #allocation3 [shape = 's32[2]{0}', space=sflag, size = 0x8, scoped, tag = 'scoped memory for tpu_custom_call.1']
    #allocation4 [shape = 's32[2]{0}', space=sflag, size = 0x8, scoped, tag = 'scoped memory for tpu_custom_call.1']
    #allocation5 [shape = 'u8[8192]{0}', space=vmem, size = 0x2000, scoped, tag = 'input window, operand 1, single buffered']
    #allocation6 [shape = 's32[1]{0}', space=sflag, size = 0x4, scoped, tag = 'scoped memory for tpu_custom_call.1']
    #allocation7 [shape = 'u8[65536]{0}', space=vmem, size = 0x10000, scoped, tag = 'input window, operand 2, single buffered']
    #allocation8 [shape = 'u8[8192]{0}', space=vmem, size = 0x2000, scoped, tag = 'output window, operand 0']
    %9 = vsyncpa [#allocation3], 0
    %s10 = scalar_lea.sflag [#allocation3], 1
    %11 = vsyncpa %s10, 0
    %12 = vsyncpa [#allocation6], 0
    %13 = vsyncpa [#allocation4], 0
    %s14 = scalar_lea.sflag [#allocation4], 1
    %15 = vsyncpa %s14, 0
    loop: start=0, step=1, limit=4
    $region2: #{tpu_custom_call.1} parent=1 // loop_pre_header
      _
    $region3: #{tpu_custom_call.1} parent=1 // loop_header
      %s17 = sphi 0, %s21
      %p18 = scmp.ge.s32.totalorder %s17, 4
      %s27 = sphi 0, %s29
      %s30 = sphi 0, %s27
      %s31 = sphi 0, %s30
      %s47 = sphi 0, %s31
      %s51 = sphi 0, %s51
      %s53 = sphi 0, %s51
      %s54 = sphi 0, %s53
      %s68 = sphi 0, %s54
      %s72 = sphi 0, %s72
      %s74 = sphi 0, %s72
      %s75 = sphi 0, %s74
      %s89 = sphi 0, %s75
      %s93 = sphi 0, %s93
      %s95 = sphi 0, %s93
      %s96 = sphi 0, %s95
      %s110 = sphi 0, %s96
      %s116 = sphi 0, %s118
      %s119 = sphi 0, %s116
      %s120 = sphi 0, %s119
      %s136 = sphi 0, %s120
    $region4: #{tpu_custom_call.1} parent=1 // loop_header_branch
      %20 = sbr.rel (%p18) target = $region8
    $region5: #{tpu_custom_call.1} parent=1 // loop_body
      %s22 = ssub.s32 %s17, 1
      %s23 = ssub.s32 %s17, 2
      %s24 = sadd.s32 %s17, 1
      %s25 = ssub.s32 %s17, %s24
      %p26 = scmp.eq.s32.totalorder %s25, 0
      %s28 = sadd.s32 %s27, 1
      %s29 = scalar_select %p26, %s27, %s28
      %p32 = pneg %p26
      %p33 = scmp.eq.s32.totalorder %s17, 1
      %p34 = por %p32, %p33
      %p35 = scmp.ne.s32.totalorder %s27, %s30
      %p36 = scmp.eq.s32.totalorder %s17, 0
      %p37 = por %p35, %p36
      %p38 = scmp.ne.s32.totalorder %s27, %s30
      %p39 = scmp.eq.s32.totalorder %s22, 1
      %p40 = por %p38, %p39
      %p41 = scmp.ne.s32.totalorder %s30, %s31
      %p42 = scmp.eq.s32.totalorder %s22, 0
      %p43 = por %p41, %p42
      %p44 = scmp.ne.s32.totalorder %s30, %s31
      %p45 = scmp.eq.s32.totalorder %s23, 1
      %p46 = por %p44, %p45
      %p48 = scmp.ne.s32.totalorder %s31, %s47
      %p49 = scmp.eq.s32.totalorder %s23, 0
      %p50 = por %p48, %p49
      %s52 = sadd.s32 %s51, 1
      %p55 = scmp.eq.s32.totalorder %s17, 1
      %p56 = scmp.ne.s32.totalorder %s51, %s53
      %p57 = scmp.eq.s32.totalorder %s17, 0
      %p58 = por %p56, %p57
      %p59 = scmp.ne.s32.totalorder %s51, %s53
      %p60 = scmp.eq.s32.totalorder %s22, 1
      %p61 = por %p59, %p60
      %p62 = scmp.ne.s32.totalorder %s53, %s54
      %p63 = scmp.eq.s32.totalorder %s22, 0
      %p64 = por %p62, %p63
      %p65 = scmp.ne.s32.totalorder %s53, %s54
      %p66 = scmp.eq.s32.totalorder %s23, 1
      %p67 = por %p65, %p66
      %p69 = scmp.ne.s32.totalorder %s54, %s68
      %p70 = scmp.eq.s32.totalorder %s23, 0
      %p71 = por %p69, %p70
      %s73 = sadd.s32 %s72, 1
      %p76 = scmp.eq.s32.totalorder %s17, 1
      %p77 = scmp.ne.s32.totalorder %s72, %s74
      %p78 = scmp.eq.s32.totalorder %s17, 0
      %p79 = por %p77, %p78
      %p80 = scmp.ne.s32.totalorder %s72, %s74
      %p81 = scmp.eq.s32.totalorder %s22, 1
      %p82 = por %p80, %p81
      %p83 = scmp.ne.s32.totalorder %s74, %s75
      %p84 = scmp.eq.s32.totalorder %s22, 0
      %p85 = por %p83, %p84
      %p86 = scmp.ne.s32.totalorder %s74, %s75
      %p87 = scmp.eq.s32.totalorder %s23, 1
      %p88 = por %p86, %p87
      %p90 = scmp.ne.s32.totalorder %s75, %s89
      %p91 = scmp.eq.s32.totalorder %s23, 0
      %p92 = por %p90, %p91
      %s94 = sadd.s32 %s93, 1
      %p97 = scmp.eq.s32.totalorder %s17, 1
      %p98 = scmp.ne.s32.totalorder %s93, %s95
      %p99 = scmp.eq.s32.totalorder %s17, 0
      %p100 = por %p98, %p99
      %p101 = scmp.ne.s32.totalorder %s93, %s95
      %p102 = scmp.eq.s32.totalorder %s22, 1
      %p103 = por %p101, %p102
      %p104 = scmp.ne.s32.totalorder %s95, %s96
      %p105 = scmp.eq.s32.totalorder %s22, 0
      %p106 = por %p104, %p105
      %p107 = scmp.ne.s32.totalorder %s95, %s96
      %p108 = scmp.eq.s32.totalorder %s23, 1
      %p109 = por %p107, %p108
      %p111 = scmp.ne.s32.totalorder %s96, %s110
      %p112 = scmp.eq.s32.totalorder %s23, 0
      %p113 = por %p111, %p112
      %s114 = ssub.s32 %s17, %s24
      %p115 = scmp.eq.s32.totalorder %s114, 0
      %s117 = sadd.s32 %s116, 1
      %s118 = scalar_select %p115, %s116, %s117
      %p121 = pneg %p115
      %p122 = scmp.eq.s32.totalorder %s17, 1
      %p123 = por %p121, %p122
      %p124 = scmp.ne.s32.totalorder %s116, %s119
      %p125 = scmp.eq.s32.totalorder %s17, 0
      %p126 = por %p124, %p125
      %p127 = scmp.ne.s32.totalorder %s116, %s119
      %p128 = scmp.eq.s32.totalorder %s22, 1
      %p129 = por %p127, %p128
      %p130 = scmp.ne.s32.totalorder %s119, %s120
      %p131 = scmp.eq.s32.totalorder %s22, 0
      %p132 = por %p130, %p131
      %p133 = scmp.ne.s32.totalorder %s119, %s120
      %p134 = scmp.eq.s32.totalorder %s23, 1
      %p135 = por %p133, %p134
      %p137 = scmp.ne.s32.totalorder %s120, %s136
      %p138 = scmp.eq.s32.totalorder %s23, 0
      %p139 = por %p137, %p138
      %p140 = scmp.le.s32.totalorder 1, %s17
      %p141 = scmp.lt.s32.totalorder %s17, 3
      %p142 = pnand %p140, %p141
      %p143 = pneg %p142
      // Predicated region
      $region9: #{tpu_custom_call.1} parent=5 // pred_check
        _
      $region10: #{tpu_custom_call.1} parent=5 // pred_check_branch
        %145 = sbr.rel (%p142) target = $region12
      $region11: #{tpu_custom_call.1} parent=5 // pred_region
        %s146 = ssub.s32 %s17, 1
        // Predicated region
        $region13: #{tpu_custom_call.1} parent=11 // pred_check
          %p147 = pneg %p64
        $region14: #{tpu_custom_call.1} parent=11 // pred_check_branch
          %149 = sbr.rel (%p147) target = $region16
        $region15: #{tpu_custom_call.1} parent=11 // pred_region
          %s151 = ssub.s32 256, 256
          %152 = vsyncadd [#allocation6], %s151
          %s153 = sshll.u32 [#allocation5], 4
          %s154 = int_to_ptr.vmem [resolvable:$true] %s153
          %159 = dma.hbm_to_vmem [thread:$0]  %s1, 256, %s154, [#allocation6], 128, 128, 8
        $region16: #{tpu_custom_call.1} parent=11 // pred_fallthru
          _
        // Predicated region
        $region17: #{tpu_custom_call.1} parent=11 // pred_check
          %p160 = pneg %p85
        $region18: #{tpu_custom_call.1} parent=11 // pred_check_branch
          %162 = sbr.rel (%p160) target = $region20
        $region19: #{tpu_custom_call.1} parent=11 // pred_region
          %s164 = ssub.s32 2048, 2048
          %165 = vsyncadd [#allocation6], %s164
          %s166 = sshll.u32 [#allocation7], 4
          %s167 = int_to_ptr.vmem [resolvable:$true] %s166
          %172 = dma.hbm_to_vmem [thread:$0]  %s2, 2048, %s167, [#allocation6], 128, 128, 8
        $region20: #{tpu_custom_call.1} parent=11 // pred_fallthru
          _
        // Predicated region
        $region21: #{tpu_custom_call.1} parent=11 // pred_check
          %p173 = pneg %p106
        $region22: #{tpu_custom_call.1} parent=11 // pred_check_branch
          %175 = sbr.rel (%p173) target = $region24
        $region23: #{tpu_custom_call.1} parent=11 // pred_region
          _
        $region24: #{tpu_custom_call.1} parent=11 // pred_fallthru
          _
      $region12: #{tpu_custom_call.1} parent=5 // pred_fallthru
        _
      %p176 = scmp.lt.s32.totalorder %s17, 2
      // Predicated region
      $region25: #{tpu_custom_call.1} parent=5 // pred_check
        %p177 = pneg %p176
      $region26: #{tpu_custom_call.1} parent=5 // pred_check_branch
        %179 = sbr.rel (%p177) target = $region28
      $region27: #{tpu_custom_call.1} parent=5 // pred_region
        // Predicated region
        $region29: #{tpu_custom_call.1} parent=27 // pred_check
          %p180 = pneg %p37
        $region30: #{tpu_custom_call.1} parent=27 // pred_check_branch
          %182 = sbr.rel (%p180) target = $region32
        $region31: #{tpu_custom_call.1} parent=27 // pred_region
          %s183 = sand.u32 %s27, 1
          %s184 = scalar_lea.sflag [#allocation3], %s183
          %s185 = sand.u32 %s27, 1
          %s186 = smul.addr %s185, 8
          %s187 = scalar_lea.vmem [#allocation2], %s186
          %s189 = ssub.s32 128, 128
          %190 = vsyncadd %s184, %s189
          %s191 = smul.addr %s17, 128
          %s192 = scalar_lea.hbm %s0, %s191
          %s194 = sshll.u32 %s187, 4
          %s195 = int_to_ptr.vmem [resolvable:$true] %s194
          %197 = dma.hbm_to_vmem [thread:$0]  %s192, 128, %s195, %s184
        $region32: #{tpu_custom_call.1} parent=27 // pred_fallthru
          _
      $region28: #{tpu_custom_call.1} parent=5 // pred_fallthru
        _
      %p198 = scmp.le.s32.totalorder 1, %s17
      %p199 = scmp.lt.s32.totalorder %s17, 3
      %p200 = pnand %p198, %p199
      %p201 = pneg %p200
      // Predicated region
      $region33: #{tpu_custom_call.1} parent=5 // pred_check
        _
      $region34: #{tpu_custom_call.1} parent=5 // pred_check_branch
        %203 = sbr.rel (%p200) target = $region36
      $region35: #{tpu_custom_call.1} parent=5 // pred_region
        %s204 = ssub.s32 %s17, 1
        %s205 = sand.u32 %s30, 1
        %s206 = scalar_lea.sflag [#allocation3], %s205
        %s207 = sand.u32 %s30, 1
        %s208 = smul.addr %s207, 8
        %s209 = scalar_lea.vmem [#allocation2], %s208
        // Predicated region
        $region37: #{tpu_custom_call.1} parent=35 // pred_check
          %p210 = pneg %p43
        $region38: #{tpu_custom_call.1} parent=35 // pred_check_branch
          %212 = sbr.rel (%p210) target = $region40
        $region39: #{tpu_custom_call.1} parent=35 // pred_region
          %213 = dma.done %s206, 128
        $region40: #{tpu_custom_call.1} parent=35 // pred_fallthru
          _
        // Predicated region
        $region41: #{tpu_custom_call.1} parent=35 // pred_check
          %p214 = pneg %p64
        $region42: #{tpu_custom_call.1} parent=35 // pred_check_branch
          %216 = sbr.rel (%p214) target = $region44
        $region43: #{tpu_custom_call.1} parent=35 // pred_region
          %217 = dma.done [#allocation6], 256
        $region44: #{tpu_custom_call.1} parent=35 // pred_fallthru
          _
        // Predicated region
        $region45: #{tpu_custom_call.1} parent=35 // pred_check
          %p218 = pneg %p85
        $region46: #{tpu_custom_call.1} parent=35 // pred_check_branch
          %220 = sbr.rel (%p218) target = $region48
        $region47: #{tpu_custom_call.1} parent=35 // pred_region
          %221 = dma.done [#allocation6], 2048
        $region48: #{tpu_custom_call.1} parent=35 // pred_fallthru
          _
        %s222 = sand.u32 %s30, 1
        %s223 = scalar_lea.sflag [#allocation3], %s222
        %s224 = sand.u32 %s30, 1
        %s225 = smul.addr %s224, 8
        %s226 = scalar_lea.vmem [#allocation2], %s225
        %p227 = pneg %p43
        %p228 = pneg %p40
        %p229 = pneg %p64
        %p230 = pneg %p61
        %p231 = pneg %p85
        %p232 = pneg %p82
        %p233 = pneg %p106
        %p234 = pneg %p103
        %p235 = pneg %p132
        %p236 = pneg %p129
        %s237 = sand.u32 %s119, 1
        %s238 = scalar_lea.sflag [#allocation4], %s237
        %s239 = sand.u32 %s119, 1
        %s240 = smul.addr %s239, 8
        %s241 = scalar_lea.vmem [#allocation8], %s240
        %v242 = vld [vmem:[%s209] sm:$0xff]
        %v243 = vld [vmem:[#allocation5] sm:$0xff]
        %v244 = vld [vmem:[#allocation5 + $0x8] sm:$0xff]
        %vm245 = vcmask 130048
        %v247 = vsel %vm245, %v242, 0
        %249 = vmatprep.subr.mxu0 0.0
        %250 = vmatpush1.msra.mxu0 %v243
        %251 = vmatprep.subr.mxu0 0.0
        %252 = vmatpush1.msra.mxu0 %v244
        %253 = vmatprep.subr.mxu0 0.0
        %254 = vmatpush1.msra.mxu0 0.0
        %255 = vmatprep.subr.mxu0 0.0
        %256 = vmatpush1.msra.mxu0 0.0
        %257 = vmatprep.subr.mxu0 0.0
        %258 = vmatpush1.msra.mxu0 0.0
        %259 = vmatprep.subr.mxu0 0.0
        %260 = vmatpush1.msra.mxu0 0.0
        %261 = vmatprep.subr.mxu0 0.0
        %262 = vmatpush1.msra.mxu0 0.0
        %263 = vmatprep.subr.mxu0 0.0
        %264 = vmatpush1.msra.mxu0 0.0
        %265 = vmatprep.subr.mxu0 0.0
        %266 = vmatpush1.msra.mxu0 0.0
        %267 = vmatprep.subr.mxu0 0.0
        %268 = vmatpush1.msra.mxu0 0.0
        %269 = vmatprep.subr.mxu0 0.0
        %270 = vmatpush1.msra.mxu0 0.0
        %271 = vmatprep.subr.mxu0 0.0
        %272 = vmatpush1.msra.mxu0 0.0
        %273 = vmatprep.subr.mxu0 0.0
        %274 = vmatpush1.msra.mxu0 0.0
        %275 = vmatprep.subr.mxu0 0.0
        %276 = vmatpush1.msra.mxu0 0.0
        %277 = vmatprep.subr.mxu0 0.0
        %278 = vmatpush1.msra.mxu0 0.0
        %279 = vmatprep.subr.mxu0 0.0
        %280 = vmatpush1.msra.mxu0 0.0
        %281 = vmatprep.subr.mxu0 0.0
        %282 = vmatpush1.msra.mxu0 0.0
        %283 = vmatprep.subr.mxu0 0.0
        %284 = vmatpush1.msra.mxu0 0.0
        %285 = vmatprep.subr.mxu0 0.0
        %286 = vmatpush1.msra.mxu0 0.0
        %287 = vmatprep.subr.mxu0 0.0
        %288 = vmatpush1.msra.mxu0 0.0
        %289 = vmatprep.subr.mxu0 0.0
        %290 = vmatpush1.msra.mxu0 0.0
        %291 = vmatprep.subr.mxu0 0.0
        %292 = vmatpush1.msra.mxu0 0.0
        %293 = vmatprep.subr.mxu0 0.0
        %294 = vmatpush1.msra.mxu0 0.0
        %295 = vmatprep.subr.mxu0 0.0
        %296 = vmatpush1.msra.mxu0 0.0
        %297 = vmatprep.subr.mxu0 0.0
        %298 = vmatpush1.msra.mxu0 0.0
        %299 = vmatprep.subr.mxu0 0.0
        %300 = vmatpush1.msra.mxu0 0.0
        %301 = vmatprep.subr.mxu0 0.0
        %302 = vmatpush1.msra.mxu0 0.0
        %303 = vmatprep.subr.mxu0 0.0
        %304 = vmatpush1.msra.mxu0 0.0
        %305 = vmatprep.subr.mxu0 0.0
        %306 = vmatpush1.msra.mxu0 0.0
        %307 = vmatprep.subr.mxu0 0.0
        %308 = vmatpush1.msra.mxu0 0.0
        %309 = vmatprep.subr.mxu0 0.0
        %310 = vmatpush1.msra.mxu0 0.0
        %311 = vmatprep.subr.mxu0 0.0
        %312 = vmatpush1.msra.mxu0 0.0
        %313 = vmatprep.mubr.f32.mxu0 0.0
        %314 = vmatmul.mubr.f32.gmra.mrb[0].mxu0 %v247
        %v315 = vpop.f32.mrb[0].mxu0
        %v316 = vadd.f32 0.0, %v315
        %v317 = vpop.f32.mrb[0].mxu0
        %318 = vdwg.mxu0
        %v319 = vmul.f32 %v316, %v316
        %320 = vadd.xlane.f32.xlu0 %v319
        %v321 = vpop.xlane.xlu0 %320
        %v322 = vmax.f32 %v321, 1e-24
        %v323 = vrsqrt.pop %v322
        %v324 = vmul.f32 %v316, %v323
        %325 = vmatprep.subr.mxu0 0.0
        %326 = vmatpush1.xpose.msra.mxu0 %v324
        %327 = vmatprep.subr.mxu0 0.0
        %328 = vmatpush1.xpose.msra.mxu0 0.0
        %329 = vmatprep.subr.mxu0 0.0
        %330 = vmatpush1.xpose.msra.mxu0 0.0
        %331 = vmatprep.subr.mxu0 0.0
        %332 = vmatpush1.xpose.msra.mxu0 0.0
        %333 = vmatprep.subr.mxu0 0.0
        %334 = vmatpush1.xpose.msra.mxu0 0.0
        %335 = vmatprep.subr.mxu0 0.0
        %336 = vmatpush1.xpose.msra.mxu0 0.0
        %337 = vmatprep.subr.mxu0 0.0
        %338 = vmatpush1.xpose.msra.mxu0 0.0
        %339 = vmatprep.subr.mxu0 0.0
        %340 = vmatpush1.xpose.msra.mxu0 0.0
        %341 = vmatprep.subr.mxu0 0.0
        %342 = vmatpush1.xpose.msra.mxu0 0.0
        %343 = vmatprep.subr.mxu0 0.0
        %344 = vmatpush1.xpose.msra.mxu0 0.0
        %345 = vmatprep.subr.mxu0 0.0
        %346 = vmatpush1.xpose.msra.mxu0 0.0
        %347 = vmatprep.subr.mxu0 0.0
        %348 = vmatpush1.xpose.msra.mxu0 0.0
        %349 = vmatprep.subr.mxu0 0.0
        %350 = vmatpush1.xpose.msra.mxu0 0.0
        %351 = vmatprep.subr.mxu0 0.0
        %352 = vmatpush1.xpose.msra.mxu0 0.0
        %353 = vmatprep.subr.mxu0 0.0
        %354 = vmatpush1.xpose.msra.mxu0 0.0
        %355 = vmatprep.subr.mxu0 0.0
        %356 = vmatpush1.xpose.msra.mxu0 0.0
        %357 = vmatprep.subr.mxu0 0.0
        %358 = vmatpush1.xpose.msra.mxu0 0.0
        %359 = vmatprep.subr.mxu0 0.0
        %360 = vmatpush1.xpose.msra.mxu0 0.0
        %361 = vmatprep.subr.mxu0 0.0
        %362 = vmatpush1.xpose.msra.mxu0 0.0
        %363 = vmatprep.subr.mxu0 0.0
        %364 = vmatpush1.xpose.msra.mxu0 0.0
        %365 = vmatprep.subr.mxu0 0.0
        %366 = vmatpush1.xpose.msra.mxu0 0.0
        %367 = vmatprep.subr.mxu0 0.0
        %368 = vmatpush1.xpose.msra.mxu0 0.0
        %369 = vmatprep.subr.mxu0 0.0
        %370 = vmatpush1.xpose.msra.mxu0 0.0
        %371 = vmatprep.subr.mxu0 0.0
        %372 = vmatpush1.xpose.msra.mxu0 0.0
        %373 = vmatprep.subr.mxu0 0.0
        %374 = vmatpush1.xpose.msra.mxu0 0.0
        %375 = vmatprep.subr.mxu0 0.0
        %376 = vmatpush1.xpose.msra.mxu0 0.0
        %377 = vmatprep.subr.mxu0 0.0
        %378 = vmatpush1.xpose.msra.mxu0 0.0
        %379 = vmatprep.subr.mxu0 0.0
        %380 = vmatpush1.xpose.msra.mxu0 0.0
        %381 = vmatprep.subr.mxu0 0.0
        %382 = vmatpush1.xpose.msra.mxu0 0.0
        %383 = vmatprep.subr.mxu0 0.0
        %384 = vmatpush1.xpose.msra.mxu0 0.0
        %385 = vmatprep.subr.mxu0 0.0
        %386 = vmatpush1.xpose.msra.mxu0 0.0
        %387 = vmatprep.subr.mxu0 0.0
        %388 = vmatpush1.xpose.msra.mxu0 0.0
        %389 = vmatprep.mubr.f32.mxu0 0.0
        %390 = vmatmul.mubr.f32.gmra.mrb[0].mxu0 %v324
        %v391 = vpop.f32.mrb[0].mxu0
        %v392 = vadd.f32 0.0, %v391
        %v393 = vpop.f32.mrb[0].mxu0
        %394 = vdwg.mxu0
        %s396 = sor.u32 1792, 4
        %397 = vrot.lane.b32.xlu0 %v392, %s396
        %v398 = vpop.permute.xlu0 %397
        %v399 = vlaneseq
        %v400 = vshrl.u32 %v399, 7
        %v401 = vlaneseq
        %v402 = vand.u32 %v401, 127
        %v403 = vadd.s32 %v400, %v402
        %v404 = vsub.s32 %v403, 4
        %vm405 = vcmp.ge.s32.totalorder %v404, 0
        %vm406 = vcmp.lt.s32.totalorder %v404, 8
        %vm407 = vmand %vm405, %vm406
        %vm408 = vcmp.lt.s32.totalorder %v402, 9
        %vm409 = vmand %vm407, %vm408
        %v410 = vsel %vm409, %v398, 0.0
        %v411 = vld [vmem:[#allocation7] sm:$0xff]
        %v412 = vld [vmem:[#allocation7 + $0x8] sm:$0xff]
        %v413 = vld [vmem:[#allocation7 + $0x10] sm:$0xff]
        %v414 = vld [vmem:[#allocation7 + $0x18] sm:$0xff]
        %v415 = vld [vmem:[#allocation7 + $0x20] sm:$0xff]
        %v416 = vld [vmem:[#allocation7 + $0x28] sm:$0xff]
        %v417 = vld [vmem:[#allocation7 + $0x30] sm:$0xff]
        %v418 = vld [vmem:[#allocation7 + $0x38] sm:$0xff]
        %v419 = vld [vmem:[#allocation7 + $0x40] sm:$0xff]
        %v420 = vld [vmem:[#allocation7 + $0x48] sm:$0xff]
        %v421 = vld [vmem:[#allocation7 + $0x50] sm:$0xff]
        %v422 = vld [vmem:[#allocation7 + $0x58] sm:$0xff]
        %v423 = vld [vmem:[#allocation7 + $0x60] sm:$0xff]
        %v424 = vld [vmem:[#allocation7 + $0x68] sm:$0xff]
        %v425 = vld [vmem:[#allocation7 + $0x70] sm:$0xff]
        %v426 = vld [vmem:[#allocation7 + $0x78] sm:$0xff]
        %v427 = vld [vmem:[%s3] sm:$0x1]
        %v429 = vlaneseq
        %v430 = vshrl.u32 %v429, 7
        %v431 = vsub.s32 0, %v430
        %v432 = vrot.slane %v427, %v431
        %434 = vmatprep.subr.mxu0 0.0
        %435 = vmatpush1.msra.mxu0 %v411
        %436 = vmatprep.subr.mxu0 0.0
        %437 = vmatpush1.msra.mxu0 %v412
        %438 = vmatprep.subr.mxu0 0.0
        %439 = vmatpush1.msra.mxu0 %v413
        %440 = vmatprep.subr.mxu0 0.0
        %441 = vmatpush1.msra.mxu0 %v414
        %442 = vmatprep.subr.mxu0 0.0
        %443 = vmatpush1.msra.mxu0 %v415
        %444 = vmatprep.subr.mxu0 0.0
        %445 = vmatpush1.msra.mxu0 %v416
        %446 = vmatprep.subr.mxu0 0.0
        %447 = vmatpush1.msra.mxu0 %v417
        %448 = vmatprep.subr.mxu0 0.0
        %449 = vmatpush1.msra.mxu0 %v418
        %450 = vmatprep.subr.mxu0 0.0
        %451 = vmatpush1.msra.mxu0 %v419
        %452 = vmatprep.subr.mxu0 0.0
        %453 = vmatpush1.msra.mxu0 %v420
        %454 = vmatprep.subr.mxu0 0.0
        %455 = vmatpush1.msra.mxu0 %v421
        %456 = vmatprep.subr.mxu0 0.0
        %457 = vmatpush1.msra.mxu0 %v422
        %458 = vmatprep.subr.mxu0 0.0
        %459 = vmatpush1.msra.mxu0 %v423
        %460 = vmatprep.subr.mxu0 0.0
        %461 = vmatpush1.msra.mxu0 %v424
        %462 = vmatprep.subr.mxu0 0.0
        %463 = vmatpush1.msra.mxu0 %v425
        %464 = vmatprep.subr.mxu0 0.0
        %465 = vmatpush1.msra.mxu0 %v426
        %466 = vmatprep.subr.mxu0 0.0
        %467 = vmatpush1.msra.mxu0 0.0
        %468 = vmatprep.subr.mxu0 0.0
        %469 = vmatpush1.msra.mxu0 0.0
        %470 = vmatprep.subr.mxu0 0.0
        %471 = vmatpush1.msra.mxu0 0.0
        %472 = vmatprep.subr.mxu0 0.0
        %473 = vmatpush1.msra.mxu0 0.0
        %474 = vmatprep.subr.mxu0 0.0
        %475 = vmatpush1.msra.mxu0 0.0
        %476 = vmatprep.subr.mxu0 0.0
        %477 = vmatpush1.msra.mxu0 0.0
        %478 = vmatprep.subr.mxu0 0.0
        %479 = vmatpush1.msra.mxu0 0.0
        %480 = vmatprep.subr.mxu0 0.0
        %481 = vmatpush1.msra.mxu0 0.0
        %482 = vmatprep.subr.mxu0 0.0
        %483 = vmatpush1.msra.mxu0 0.0
        %484 = vmatprep.subr.mxu0 0.0
        %485 = vmatpush1.msra.mxu0 0.0
        %486 = vmatprep.subr.mxu0 0.0
        %487 = vmatpush1.msra.mxu0 0.0
        %488 = vmatprep.subr.mxu0 0.0
        %489 = vmatpush1.msra.mxu0 0.0
        %490 = vmatprep.subr.mxu0 0.0
        %491 = vmatpush1.msra.mxu0 0.0
        %492 = vmatprep.subr.mxu0 0.0
        %493 = vmatpush1.msra.mxu0 0.0
        %494 = vmatprep.subr.mxu0 0.0
        %495 = vmatpush1.msra.mxu0 0.0
        %496 = vmatprep.subr.mxu0 0.0
        %497 = vmatpush1.msra.mxu0 0.0
        %498 = vmatprep.mubr.f32.mxu0 0.0
        %499 = vmatmul.mubr.f32.gmra.mrb[0].mxu0 %v410
        %v500 = vpop.f32.mrb[0].mxu0
        %v501 = vadd.f32 %v432, %v500
        %v502 = vpop.f32.mrb[0].mxu0
        %503 = vdwg.mxu0
        %v504 = vmax.f32 %v501, 0.0
        %505 = vst [vmem:[%s241] sm:$0xff] %v504
        %s506 = sand.u32 %s119, 1
        %s507 = scalar_lea.sflag [#allocation4], %s506
        %s508 = sand.u32 %s119, 1
        %s509 = smul.addr %s508, 8
        %s510 = scalar_lea.vmem [#allocation8], %s509
        // Predicated region
        $region49: #{tpu_custom_call.1} parent=35 // pred_check
          %p511 = pneg %p129
        $region50: #{tpu_custom_call.1} parent=35 // pred_check_branch
          %513 = sbr.rel (%p511) target = $region52
        $region51: #{tpu_custom_call.1} parent=35 // pred_region
          %s515 = ssub.s32 128, 128
          %516 = vsyncadd %s507, %s515
          %s517 = smul.addr %s22, 128
          %s518 = scalar_lea.hbm %s4, %s517
          %s520 = sshll.u32 %s510, 4
          %s521 = int_to_ptr.vmem [resolvable:$true] %s520
          %523 = dma.vmem_to_hbm [thread:$0]  %s521, 128, %s518, %s507
        $region52: #{tpu_custom_call.1} parent=35 // pred_fallthru
          _
      $region36: #{tpu_custom_call.1} parent=5 // pred_fallthru
        _
      %p524 = scmp.le.s32.totalorder 2, %s17
      // Predicated region
      $region53: #{tpu_custom_call.1} parent=5 // pred_check
        %p525 = pneg %p524
      $region54: #{tpu_custom_call.1} parent=5 // pred_check_branch
        %527 = sbr.rel (%p525) target = $region56
      $region55: #{tpu_custom_call.1} parent=5 // pred_region
        %s528 = ssub.s32 %s17, 2
        // Predicated region
        $region57: #{tpu_custom_call.1} parent=55 // pred_check
          %p529 = pneg %p135
        $region58: #{tpu_custom_call.1} parent=55 // pred_check_branch
          %531 = sbr.rel (%p529) target = $region60
        $region59: #{tpu_custom_call.1} parent=55 // pred_region
          %s532 = sand.u32 %s120, 1
          %s533 = scalar_lea.sflag [#allocation4], %s532
          %s534 = sand.u32 %s120, 1
          %s535 = smul.addr %s534, 8
          %s536 = scalar_lea.vmem [#allocation8], %s535
          %537 = dma.done %s533, 128
        $region60: #{tpu_custom_call.1} parent=55 // pred_fallthru
          _
      $region56: #{tpu_custom_call.1} parent=5 // pred_fallthru
        _
    $region6: #{tpu_custom_call.1} parent=1 // loop_footer
      %s21 = sadd.s32 1, %s17
    $region7: #{tpu_custom_call.1} parent=1 // loop_footer_branch
      %16 = sbr.rel target = $region3
    $region8: #{tpu_custom_call.1} parent=1 // loop_exit
      _
    %538 = vsyncpa [#allocation3], 1
    %s539 = scalar_lea.sflag [#allocation3], 1
    %540 = vsyncpa %s539, 1
    %541 = vsyncpa [#allocation6], 1
    %542 = vsyncpa [#allocation4], 1
    %s543 = scalar_lea.sflag [#allocation4], 1
    %544 = vsyncpa %s543, 1

</llo_original>
